<compile_context>
chip_gen: v5e
topology: v5e:2x2
jax: 0.10.0
libtpu: 0.0.40
codegen_flags: <defaults>
</compile_context>

<pallas_src>
import functools

import jax
import jax.numpy as jnp
from jax.experimental import pallas as pl
from jax.experimental.pallas import tpu as pltpu


def _round_up(x, m):
    return ((x + m - 1) // m) * m


def gaussian_policy_kernel(x_ref, *refs, activation="relu"):
    """refs = (w0, b0, w1, b1, ..., wL, bL, means_out).

    Computes the full MLP: activation between consecutive Linear layers, no
    activation on the output layer.  Accumulation is f32 regardless of the
    I/O dtype.
    """
    means_ref = refs[-1]
    wb_refs = refs[:-1]
    n_linear = len(wb_refs) // 2

    h = x_ref[...]
    for li in range(n_linear):
        if li > 0:
            # Activation sits between every pair of consecutive Linear layers.
            if activation == "relu":
                h = jnp.maximum(h, 0.0)
            else:  # "tanh"
                h = jnp.tanh(h)
        w = wb_refs[2 * li][...]
        b = wb_refs[2 * li + 1][...]
        # Cast h to the weight dtype so a bf16 weight stack runs the MXU at
        # native bf16 rate; f32 accumulate via preferred_element_type.
        h = jnp.dot(h.astype(w.dtype), w, preferred_element_type=jnp.float32)
        h = h + b.astype(jnp.float32)
    means_ref[...] = h.astype(means_ref.dtype)


def gaussian_policy_forward(x, weights, biases, log_stds, *, tb=None,
                            activation="relu", io_dtype=None):
    """Pallas wrapper.

    weights[i]: (in_i, out_i)  -- transpose of PyTorch nn.Linear.weight
    biases[i]:  (out_i,)
    log_stds:   (action_dim,)
    io_dtype:   optional dtype (e.g. jnp.bfloat16) for x/weights/biases/means.
    Returns (means, stds) with shape (B, action_dim).
    """
    B, obs_dim = x.shape
    action_dim = int(log_stds.shape[-1])

    if io_dtype is not None:
        x = x.astype(io_dtype)
        weights = [w.astype(io_dtype) for w in weights]
        biases = [b.astype(io_dtype) for b in biases]
    out_dtype = x.dtype

    # Biases as (1, out) rows so they land in VMEM as 2-D tiles.
    b2 = [b.reshape(1, -1) for b in biases]

    # Batch tile: large tiles amortize the ~0.35us per-grid-step overhead; for
    # B > 8 cap the tile so the grid has >= 2 steps (both v7x TCs get work).
    if tb is None:
        if B > 8:
            tb = min(1024, _round_up(pl.cdiv(B, 2), 8))
        else:
            tb = _round_up(B, 8)
    tb = max(8, _round_up(int(tb), 8))

    grid = (pl.cdiv(B, tb),)

    # x unpadded: block last dim == full obs_dim is legal; the first matmul
    # simply runs with K = obs_dim (the compiler pads in-vreg for free).
    in_specs = [pl.BlockSpec((tb, obs_dim), lambda i: (i, 0))]
    args = [x]
    for w, b in zip(weights, b2):
        # Constant index maps -> weights/biases stay resident in VMEM across
        # grid steps (no re-DMA between consecutive steps).
        in_specs.append(pl.BlockSpec(w.shape, lambda i: (0, 0)))
        in_specs.append(pl.BlockSpec(b.shape, lambda i: (0, 0)))
        args += [w, b]

    # Narrow (B, action_dim) output: no 128-lane padding, no wrapper slice.
    out_specs = pl.BlockSpec((tb, action_dim), lambda i: (i, 0))
    out_shape = jax.ShapeDtypeStruct((B, action_dim), out_dtype)

    kernel = functools.partial(gaussian_policy_kernel, activation=activation)

    means = pl.pallas_call(
        kernel,
        grid=grid,
        in_specs=in_specs,
        out_specs=out_specs,
        out_shape=out_shape,
        compiler_params=pltpu.CompilerParams(
            dimension_semantics=("parallel",),
            vmem_limit_bytes=32 * 1024 * 1024,
        ),
    )(*args)

    # stds = ones_like(means) * exp(log_stds): batch-independent broadcast;
    # computed in the wrapper (fused by XLA) instead of a second output DMA
    # chain per grid step.
    stds = jnp.broadcast_to(jnp.exp(log_stds).astype(means.dtype), means.shape)
    return means, stds


def make_params(key, obs_dim, action_dim, hidden_dim, n_layers):
    """Deterministic synthetic init matching GaussianPolicy.__init__ shapes.

    Linear stack: (obs->hid), then (hid->hid) x (n_layers-1), then (hid->act).
    log_stds is initialized to zeros (as in the PyTorch module).
    """
    dims = [obs_dim] + [hidden_dim] * n_layers + [action_dim]
    weights, biases = [], []
    for i in range(len(dims) - 1):
        key, kw, kb = jax.random.split(key, 3)
        weights.append(0.1 * jax.random.normal(kw, (dims[i], dims[i + 1]), jnp.float32))
        biases.append(0.1 * jax.random.normal(kb, (dims[i + 1],), jnp.float32))
    log_stds = jnp.zeros((action_dim,), jnp.float32)
    return weights, biases, log_stds


def reference_forward(x, weights, biases, log_stds, activation="relu"):
    h = x
    for li, (w, b) in enumerate(zip(weights, biases)):
        if li > 0:
            h = jnp.maximum(h, 0.0) if activation == "relu" else jnp.tanh(h)
        h = h @ w + b
    means = h
    stds = jnp.ones_like(means) * jnp.exp(log_stds)
    return means, stds


if __name__ == "__main__":
    obs_dim, action_dim, hidden_dim, n_layers = 16, 8, 32, 2
    batch = 8

    key = jax.random.PRNGKey(0)
    key, kx = jax.random.split(key)
    x = jax.random.normal(kx, (batch, obs_dim), jnp.float32)

    weights, biases, log_stds = make_params(key, obs_dim, action_dim, hidden_dim, n_layers)

    # f32 path, small single-tile batch.
    means, stds = gaussian_policy_forward(x, weights, biases, log_stds)
    jax.block_until_ready((means, stds))
    ref_means, ref_stds = reference_forward(x, weights, biases, log_stds)
    assert means.shape == (batch, action_dim) and stds.shape == (batch, action_dim)
    assert jnp.allclose(means, ref_means, atol=1e-5, rtol=1e-5)
    assert jnp.allclose(stds, ref_stds, atol=1e-5, rtol=1e-5)

    # Ragged, larger batch: exercises cdiv grid + partial last tile (and the
    # >=2-grid-step heuristic for v7x).
    key, kx2 = jax.random.split(key)
    x2 = jax.random.normal(kx2, (37, obs_dim), jnp.float32)
    m2, s2 = gaussian_policy_forward(x2, weights, biases, log_stds)
    jax.block_until_ready((m2, s2))
    rm2, rs2 = reference_forward(x2, weights, biases, log_stds)
    assert m2.shape == (37, action_dim) and s2.shape == (37, action_dim)
    assert jnp.allclose(m2, rm2, atol=1e-5, rtol=1e-5)
    assert jnp.allclose(s2, rs2, atol=1e-5, rtol=1e-5)

    # bf16 I/O path (halved HBM bytes); compare against the f32 reference with
    # a loosened tolerance appropriate for bf16 inputs / f32 accumulation.
    m3, s3 = gaussian_policy_forward(x2, weights, biases, log_stds,
                                     io_dtype=jnp.bfloat16)
    jax.block_until_ready((m3, s3))
    assert m3.dtype == jnp.bfloat16 and s3.dtype == jnp.bfloat16
    assert jnp.allclose(m3.astype(jnp.float32), rm2, atol=5e-2, rtol=5e-2)
    assert jnp.allclose(s3.astype(jnp.float32), rs2, atol=5e-2, rtol=5e-2)

    # tanh activation variant (module supports 'relu' and 'tanh').
    m4, s4 = gaussian_policy_forward(x, weights, biases, log_stds, activation="tanh")
    jax.block_until_ready((m4, s4))
    rm4, rs4 = reference_forward(x, weights, biases, log_stds, activation="tanh")
    assert jnp.allclose(m4, rm4, atol=1e-5, rtol=1e-5)
    assert jnp.allclose(s4, rs4, atol=1e-5, rtol=1e-5)

    print("KERNEL_OK")
</pallas_src>

<mosaic_0001>
module attributes {stable_mosaic.version = 11 : i64} {
  func.func @gaussian_policy_kernel(%arg0: i32, %arg1: memref<8x16xf32, #tpu.memory_space<vmem>>, %arg2: memref<16x32xf32, #tpu.memory_space<vmem>>, %arg3: memref<1x32xf32, #tpu.memory_space<vmem>>, %arg4: memref<32x32xf32, #tpu.memory_space<vmem>>, %arg5: memref<1x32xf32, #tpu.memory_space<vmem>>, %arg6: memref<32x8xf32, #tpu.memory_space<vmem>>, %arg7: memref<1x8xf32, #tpu.memory_space<vmem>>, %arg8: memref<8x8xf32, #tpu.memory_space<vmem>>) attributes {dimension_semantics = [#tpu.dimension_semantics<parallel>], iteration_bounds = array<i64: 1>, scalar_prefetch = 0 : i64, scratch_operands = 0 : i64, tpu.core_type = #tpu.core_type<tc>, window_params = [{transform_indices = @transform_0, window_bounds = array<i64: 8, 16>}, {pipeline_mode = #tpu.pipeline_mode<synchronous>, transform_indices = @transform_1, window_bounds = array<i64: 16, 32>}, {pipeline_mode = #tpu.pipeline_mode<synchronous>, transform_indices = @transform_2, window_bounds = array<i64: 1, 32>}, {pipeline_mode = #tpu.pipeline_mode<synchronous>, transform_indices = @transform_3, window_bounds = array<i64: 32, 32>}, {pipeline_mode = #tpu.pipeline_mode<synchronous>, transform_indices = @transform_4, window_bounds = array<i64: 1, 32>}, {pipeline_mode = #tpu.pipeline_mode<synchronous>, transform_indices = @transform_5, window_bounds = array<i64: 32, 8>}, {pipeline_mode = #tpu.pipeline_mode<synchronous>, transform_indices = @transform_6, window_bounds = array<i64: 1, 8>}, {transform_indices = @transform_7, window_bounds = array<i64: 8, 8>}]} {
    %c0 = arith.constant 0 : index
    %c0_0 = arith.constant 0 : index
    %0 = vector.load %arg1[%c0, %c0_0] : memref<8x16xf32, #tpu.memory_space<vmem>>, vector<8x16xf32>
    %c0_1 = arith.constant 0 : index
    %c0_2 = arith.constant 0 : index
    %1 = vector.load %arg2[%c0_1, %c0_2] : memref<16x32xf32, #tpu.memory_space<vmem>>, vector<16x32xf32>
    %c0_3 = arith.constant 0 : index
    %c0_4 = arith.constant 0 : index
    %2 = vector.load %arg3[%c0_3, %c0_4] : memref<1x32xf32, #tpu.memory_space<vmem>>, vector<1x32xf32>
    %cst = arith.constant dense<0.000000e+00> : vector<8x32xf32>
    %3 = tpu.matmul %0, %1, %cst {dimension_numbers = #tpu.dot_dimension_numbers<[1], [0], [0], [1], [0, 0, 1, 1], [], []>} : vector<8x16xf32>, vector<16x32xf32>, vector<8x32xf32> -> vector<8x32xf32>
    %4 = vector.broadcast %2 : vector<1x32xf32> to vector<8x32xf32>
    %5 = arith.addf %3, %4 : vector<8x32xf32>
    %cst_5 = arith.constant 0.000000e+00 : f32
    %6 = vector.broadcast %cst_5 : f32 to vector<8x32xf32>
    %7 = arith.maximumf %5, %6 : vector<8x32xf32>
    %c0_6 = arith.constant 0 : index
    %c0_7 = arith.constant 0 : index
    %8 = vector.load %arg4[%c0_6, %c0_7] : memref<32x32xf32, #tpu.memory_space<vmem>>, vector<32x32xf32>
    %c0_8 = arith.constant 0 : index
    %c0_9 = arith.constant 0 : index
    %9 = vector.load %arg5[%c0_8, %c0_9] : memref<1x32xf32, #tpu.memory_space<vmem>>, vector<1x32xf32>
    %cst_10 = arith.constant dense<0.000000e+00> : vector<8x32xf32>
    %10 = tpu.matmul %7, %8, %cst_10 {dimension_numbers = #tpu.dot_dimension_numbers<[1], [0], [0], [1], [0, 0, 1, 1], [], []>} : vector<8x32xf32>, vector<32x32xf32>, vector<8x32xf32> -> vector<8x32xf32>
    %11 = vector.broadcast %9 : vector<1x32xf32> to vector<8x32xf32>
    %12 = arith.addf %10, %11 : vector<8x32xf32>
    %cst_11 = arith.constant 0.000000e+00 : f32
    %13 = vector.broadcast %cst_11 : f32 to vector<8x32xf32>
    %14 = arith.maximumf %12, %13 : vector<8x32xf32>
    %c0_12 = arith.constant 0 : index
    %c0_13 = arith.constant 0 : index
    %15 = vector.load %arg6[%c0_12, %c0_13] : memref<32x8xf32, #tpu.memory_space<vmem>>, vector<32x8xf32>
    %c0_14 = arith.constant 0 : index
    %c0_15 = arith.constant 0 : index
    %16 = vector.load %arg7[%c0_14, %c0_15] : memref<1x8xf32, #tpu.memory_space<vmem>>, vector<1x8xf32>
    %cst_16 = arith.constant dense<0.000000e+00> : vector<8x8xf32>
    %17 = tpu.matmul %14, %15, %cst_16 {dimension_numbers = #tpu.dot_dimension_numbers<[1], [0], [0], [1], [0, 0, 1, 1], [], []>} : vector<8x32xf32>, vector<32x8xf32>, vector<8x8xf32> -> vector<8x8xf32>
    %18 = vector.broadcast %16 : vector<1x8xf32> to vector<8x8xf32>
    %19 = arith.addf %17, %18 : vector<8x8xf32>
    %c0_17 = arith.constant 0 : index
    %c0_18 = arith.constant 0 : index
    %20 = vector.load %arg8[%c0_17, %c0_18] : memref<8x8xf32, #tpu.memory_space<vmem>>, vector<8x8xf32>
    tpu.vector_store %arg8[%c0_17, %c0_18], %19 {strides = array<i32>} : memref<8x8xf32, #tpu.memory_space<vmem>>, vector<8x8xf32>,
    return
  }
  func.func @transform_0(%arg0: i32) -> (i32, i32) {
    %c0_i32 = arith.constant 0 : i32
    %c0_i32_0 = arith.constant 0 : i32
    return %arg0, %c0_i32 : i32, i32
  }
  func.func @transform_1(%arg0: i32) -> (i32, i32) {
    %c0_i32 = arith.constant 0 : i32
    %c0_i32_0 = arith.constant 0 : i32
    %c0_i32_1 = arith.constant 0 : i32
    return %c0_i32, %c0_i32_0 : i32, i32
  }
  func.func @transform_2(%arg0: i32) -> (i32, i32) {
    %c0_i32 = arith.constant 0 : i32
    %c0_i32_0 = arith.constant 0 : i32
    %c0_i32_1 = arith.constant 0 : i32
    return %c0_i32, %c0_i32_0 : i32, i32
  }
  func.func @transform_3(%arg0: i32) -> (i32, i32) {
    %c0_i32 = arith.constant 0 : i32
    %c0_i32_0 = arith.constant 0 : i32
    %c0_i32_1 = arith.constant 0 : i32
    return %c0_i32, %c0_i32_0 : i32, i32
  }
  func.func @transform_4(%arg0: i32) -> (i32, i32) {
    %c0_i32 = arith.constant 0 : i32
    %c0_i32_0 = arith.constant 0 : i32
    %c0_i32_1 = arith.constant 0 : i32
    return %c0_i32, %c0_i32_0 : i32, i32
  }
  func.func @transform_5(%arg0: i32) -> (i32, i32) {
    %c0_i32 = arith.constant 0 : i32
    %c0_i32_0 = arith.constant 0 : i32
    %c0_i32_1 = arith.constant 0 : i32
    return %c0_i32, %c0_i32_0 : i32, i32
  }
  func.func @transform_6(%arg0: i32) -> (i32, i32) {
    %c0_i32 = arith.constant 0 : i32
    %c0_i32_0 = arith.constant 0 : i32
    %c0_i32_1 = arith.constant 0 : i32
    return %c0_i32, %c0_i32_0 : i32, i32
  }
  func.func @transform_7(%arg0: i32) -> (i32, i32) {
    %c0_i32 = arith.constant 0 : i32
    %c0_i32_0 = arith.constant 0 : i32
    return %arg0, %c0_i32 : i32, i32
  }
}

</mosaic_0001>

<llo_original>
// kernel: tpu_custom_call.1
$region0: #{tpu_custom_call.1}
  #allocation0 [shape = 'u32[]', space=smem, size = 0x4, offset = 0x4, fixed_abs, tag = 'smem constant byte address 0x4 - core index']
  #allocation1 [shape = 'u32[72,128]{1,0:T(1,128)}', space=vmem, size = 0x9000, scoped, tag = 'internal scratch']
  %s0 = inlined_call_operand.vmem [shape: f32[8,16], index: 0, kind: input, shape index: {}]
  %s1 = inlined_call_operand.hbm [shape: f32[16,32], index: 1, kind: input, shape index: {}]
  %s2 = inlined_call_operand.vmem [shape: f32[1,32], index: 2, kind: input, shape index: {}]
  %s3 = inlined_call_operand.vmem [shape: f32[32,32], index: 3, kind: input, shape index: {}]
  %s4 = inlined_call_operand.vmem [shape: f32[1,32], index: 4, kind: input, shape index: {}]
  %s5 = inlined_call_operand.vmem [shape: f32[32,8], index: 5, kind: input, shape index: {}]
  %s6 = inlined_call_operand.vmem [shape: f32[1,8], index: 6, kind: input, shape index: {}]
  %s7 = inlined_call_operand.hbm [shape: f32[8,8], index: 7, kind: output, shape index: {}]
  %s8 = sld [smem:[#allocation0]]
  $region42: #{tpu_custom_call.1} parent=0
    _
  %s10 = ssub.s32 1, %s8
  %s11 = scalar_select 0, %s10, %s8
  $region1: #{tpu_custom_call.1} parent=0
    #allocation2 [shape = 'u8[8192]{0}', space=vmem, size = 0x2000, scoped, tag = 'input window, operand 1, single buffered']
    #allocation3 [shape = 's32[1]{0}', space=sflag, size = 0x4, scoped, tag = 'scoped memory for tpu_custom_call.1']
    #allocation4 [shape = 's32[1]{0}', space=sflag, size = 0x4, scoped, tag = 'scoped memory for tpu_custom_call.1']
    #allocation5 [shape = 'u8[4096]{0}', space=vmem, size = 0x1000, scoped, tag = 'output window, operand 0, single buffered']
    %12 = vsyncpa [#allocation3], 0
    %13 = vsyncpa [#allocation4], 0
    // Predicated region
    $region2: #{tpu_custom_call.1} parent=1 // pred_check
      _
    $region3: #{tpu_custom_call.1} parent=1 // pred_check_branch
      %15 = sbr.rel (0) target = $region5
    $region4: #{tpu_custom_call.1} parent=1 // pred_region
      _
    $region5: #{tpu_custom_call.1} parent=1 // pred_fallthru
      _
    // Predicated region
    $region6: #{tpu_custom_call.1} parent=1 // pred_check
      _
    $region7: #{tpu_custom_call.1} parent=1 // pred_check_branch
      %17 = sbr.rel (0) target = $region9
    $region8: #{tpu_custom_call.1} parent=1 // pred_region
      %19 = vsyncadd [#allocation3], 0
      %s20 = sshll.u32 %s1, 4
      %s21 = int_to_ptr.hbm [resolvable:$true] %s20
      %s22 = sshll.u32 [#allocation2], 4
      %s23 = int_to_ptr.vmem [resolvable:$true] %s22
      %28 = dma.hbm_to_vmem [thread:$0]  %s21, 256, %s23, [#allocation3], 128, 128, 8
    $region9: #{tpu_custom_call.1} parent=1 // pred_fallthru
      _
    // Predicated region
    $region10: #{tpu_custom_call.1} parent=1 // pred_check
      _
    $region11: #{tpu_custom_call.1} parent=1 // pred_check_branch
      %30 = sbr.rel (0) target = $region13
    $region12: #{tpu_custom_call.1} parent=1 // pred_region
      _
    $region13: #{tpu_custom_call.1} parent=1 // pred_fallthru
      _
    // Predicated region
    $region14: #{tpu_custom_call.1} parent=1 // pred_check
      _
    $region15: #{tpu_custom_call.1} parent=1 // pred_check_branch
      %32 = sbr.rel (0) target = $region17
    $region16: #{tpu_custom_call.1} parent=1 // pred_region
      _
    $region17: #{tpu_custom_call.1} parent=1 // pred_fallthru
      _
    // Predicated region
    $region18: #{tpu_custom_call.1} parent=1 // pred_check
      _
    $region19: #{tpu_custom_call.1} parent=1 // pred_check_branch
      %34 = sbr.rel (0) target = $region21
    $region20: #{tpu_custom_call.1} parent=1 // pred_region
      _
    $region21: #{tpu_custom_call.1} parent=1 // pred_fallthru
      _
    // Predicated region
    $region22: #{tpu_custom_call.1} parent=1 // pred_check
      _
    $region23: #{tpu_custom_call.1} parent=1 // pred_check_branch
      %36 = sbr.rel (0) target = $region25
    $region24: #{tpu_custom_call.1} parent=1 // pred_region
      _
    $region25: #{tpu_custom_call.1} parent=1 // pred_fallthru
      _
    // Predicated region
    $region26: #{tpu_custom_call.1} parent=1 // pred_check
      _
    $region27: #{tpu_custom_call.1} parent=1 // pred_check_branch
      %38 = sbr.rel (0) target = $region29
    $region28: #{tpu_custom_call.1} parent=1 // pred_region
      _
    $region29: #{tpu_custom_call.1} parent=1 // pred_fallthru
      _
    // Predicated region
    $region30: #{tpu_custom_call.1} parent=1 // pred_check
      _
    $region31: #{tpu_custom_call.1} parent=1 // pred_check_branch
      %40 = sbr.rel (0) target = $region33
    $region32: #{tpu_custom_call.1} parent=1 // pred_region
      %42 = dma.done [#allocation3], 256
    $region33: #{tpu_custom_call.1} parent=1 // pred_fallthru
      _
    %v43 = vld [vmem:[%s0] sm:$0xff]
    %v44 = vld [vmem:[#allocation2] sm:$0xff]
    %v45 = vld [vmem:[#allocation2 + $0x8] sm:$0xff]
    %v46 = vld [vmem:[%s2] sm:$0x1]
    %v48 = vperm.slane %v46, 0
    %vm50 = vcmask 130048
    %v52 = vsel %vm50, %v43, 0
    %54 = vmatpush.msra.mxu0 0.0
    %55 = vmatpush.msra.mxu0 0.0
    %56 = vmatpush.msra.mxu0 0.0
    %57 = vmatpush.msra.mxu0 0.0
    %58 = vmatpush.msra.mxu0 0.0
    %59 = vmatpush.msra.mxu0 0.0
    %60 = vmatpush.msra.mxu0 0.0
    %61 = vmatpush.msra.mxu0 0.0
    %62 = vmatpush.msra.mxu0 0.0
    %63 = vmatpush.msra.mxu0 0.0
    %64 = vmatpush.msra.mxu0 0.0
    %65 = vmatpush.msra.mxu0 0.0
    %66 = vmatpush.msra.mxu0 0.0
    %67 = vmatpush.msra.mxu0 0.0
    %68 = vmatpush.msra.mxu0 %v45
    %69 = vmatpush.msra.mxu0 %v44
    %70 = vmatmul.f32.gmra.mxu0 %v52
    %v71 = vpop.f32.mrf.mxu0
    %v72 = vadd.f32 %v48, %v71
    %73 = vdwg.mxu0
    %v74 = vmax.f32 %v72, 0.0
    %v75 = vld [vmem:[%s3] sm:$0xff]
    %v76 = vld [vmem:[%s3 + $0x8] sm:$0xff]
    %v77 = vld [vmem:[%s3 + $0x10] sm:$0xff]
    %v78 = vld [vmem:[%s3 + $0x18] sm:$0xff]
    %v79 = vld [vmem:[%s4] sm:$0x1]
    %v81 = vperm.slane %v79, 0
    %vm83 = vcmask 261120
    %v85 = vsel %vm83, %v74, 0
    %87 = vmatpush.msra.mxu0 0.0
    %88 = vmatpush.msra.mxu0 0.0
    %89 = vmatpush.msra.mxu0 0.0
    %90 = vmatpush.msra.mxu0 0.0
    %91 = vmatpush.msra.mxu0 0.0
    %92 = vmatpush.msra.mxu0 0.0
    %93 = vmatpush.msra.mxu0 0.0
    %94 = vmatpush.msra.mxu0 0.0
    %95 = vmatpush.msra.mxu0 0.0
    %96 = vmatpush.msra.mxu0 0.0
    %97 = vmatpush.msra.mxu0 0.0
    %98 = vmatpush.msra.mxu0 0.0
    %99 = vmatpush.msra.mxu0 %v78
    %100 = vmatpush.msra.mxu0 %v77
    %101 = vmatpush.msra.mxu0 %v76
    %102 = vmatpush.msra.mxu0 %v75
    %103 = vmatmul.f32.gmra.mxu0 %v85
    %v104 = vpop.f32.mrf.mxu0
    %v105 = vadd.f32 %v81, %v104
    %106 = vdwg.mxu0
    %v107 = vmax.f32 %v105, 0.0
    %v108 = vld [vmem:[%s5] sm:$0xff]
    %v109 = vld [vmem:[%s5 + $0x8] sm:$0xff]
    %v110 = vld [vmem:[%s5 + $0x10] sm:$0xff]
    %v111 = vld [vmem:[%s5 + $0x18] sm:$0xff]
    %v112 = vld [vmem:[%s6] sm:$0x1]
    %v114 = vperm.slane %v112, 0
    %v117 = vsel %vm83, %v107, 0
    %119 = vmatpush.msra.mxu0 0.0
    %120 = vmatpush.msra.mxu0 0.0
    %121 = vmatpush.msra.mxu0 0.0
    %122 = vmatpush.msra.mxu0 0.0
    %123 = vmatpush.msra.mxu0 0.0
    %124 = vmatpush.msra.mxu0 0.0
    %125 = vmatpush.msra.mxu0 0.0
    %126 = vmatpush.msra.mxu0 0.0
    %127 = vmatpush.msra.mxu0 0.0
    %128 = vmatpush.msra.mxu0 0.0
    %129 = vmatpush.msra.mxu0 0.0
    %130 = vmatpush.msra.mxu0 0.0
    %131 = vmatpush.msra.mxu0 %v111
    %132 = vmatpush.msra.mxu0 %v110
    %133 = vmatpush.msra.mxu0 %v109
    %134 = vmatpush.msra.mxu0 %v108
    %135 = vmatmul.f32.gmra.mxu0 %v117
    %v136 = vpop.f32.mrf.mxu0
    %v137 = vadd.f32 %v114, %v136
    %138 = vdwg.mxu0
    %vm139 = vcmask 64512
    %140 = vst.msk [vmem:[#allocation5] sm:$0xff] %vm139, %v137
    // Predicated region
    $region34: #{tpu_custom_call.1} parent=1 // pred_check
      _
    $region35: #{tpu_custom_call.1} parent=1 // pred_check_branch
      %142 = sbr.rel (0) target = $region37
    $region36: #{tpu_custom_call.1} parent=1 // pred_region
      %144 = vsyncadd [#allocation4], 0
      %s146 = sshll.u32 [#allocation5], 4
      %s147 = int_to_ptr.vmem [resolvable:$true] %s146
      %s148 = sshll.u32 %s7, 4
      %s149 = int_to_ptr.hbm [resolvable:$true] %s148
      %151 = dma.vmem_to_hbm [thread:$0]  %s147, 128, %s149, [#allocation4]
    $region37: #{tpu_custom_call.1} parent=1 // pred_fallthru
      _
    // Predicated region
    $region38: #{tpu_custom_call.1} parent=1 // pred_check
      _
    $region39: #{tpu_custom_call.1} parent=1 // pred_check_branch
      %153 = sbr.rel (0) target = $region41
    $region40: #{tpu_custom_call.1} parent=1 // pred_region
      %155 = dma.done [#allocation4], 128
    $region41: #{tpu_custom_call.1} parent=1 // pred_fallthru
      _
    %156 = vsyncpa [#allocation3], 1
    %157 = vsyncpa [#allocation4], 1

</llo_original>
